<compile_context>
chip_gen: v7x
topology: tpu7x:2x2x1
jax: 0.10.0
libtpu: 0.0.40
codegen_flags: <defaults>
</compile_context>

<pallas_src>
import functools
import math

import jax
import jax.numpy as jnp
from jax.experimental import pallas as pl
from jax.experimental.pallas import tpu as pltpu


# ~2 MiB of x per step; >= _MIN_GRID_STEPS steps (>= 4 per v7x TC) before tiles grow.
_TARGET_X_TILE_BYTES = 2 * 1024 * 1024
_MAX_TILE_ROWS = 2048
_MIN_GRID_STEPS = 8


def _build_pe(max_len: int, d_model: int) -> jnp.ndarray:
    """Deterministic sinusoidal positional-encoding table, shape (max_len, d_model)."""
    position = jnp.arange(0, max_len, dtype=jnp.float32)[:, None]            # (L, 1)
    div_term = jnp.exp(
        jnp.arange(0, d_model, 2, dtype=jnp.float32) * (-math.log(10000.0) / d_model)
    )
    pe = jnp.zeros((max_len, d_model), dtype=jnp.float32)
    pe = pe.at[:, 0::2].set(jnp.sin(position * div_term))
    if d_model % 2 == 1:
        pe = pe.at[:, 1::2].set(jnp.cos(position * div_term[:-1]))
    else:
        pe = pe.at[:, 1::2].set(jnp.cos(position * div_term))
    return pe


def _pe_kernel(scale_ref, x_ref, pe_ref, o_ref, *, lane_repeat: int):
    """scale_ref: (1,) SMEM f32.  x_ref/o_ref: (ts, W).  pe_ref: (ts, D) or (ts, W)."""
    # Scale at the narrow (ts, D) width BEFORE replication: fewer vmuls, and no extra
    # full-width live temporary beyond the broadcast itself.
    pe = scale_ref[0] * pe_ref[...]                      # f32
    if lane_repeat > 1:
        # Replicate pe across the batch along the lane axis: (ts, D) -> (ts, B*D).
        # Lane-aligned (D % 128 == 0) on this path.
        pe = jnp.tile(pe, (1, lane_repeat))
    o_ref[...] = (x_ref[...].astype(jnp.float32) + pe).astype(o_ref.dtype)


def _choose_tile_s(seq_len: int, row_bytes_x: int) -> int:
    """Sequence-tile rows: ~2 MiB of x per step, multiple of 8, and >= 8 grid steps
    (>= 4 per v7x TensorCore) whenever the sequence length permits."""
    if seq_len <= 8:
        return seq_len                       # block dim == full S (allowed)
    ts = _TARGET_X_TILE_BYTES // max(row_bytes_x, 1)
    ts = max(8, min(ts, _MAX_TILE_ROWS))
    ts = (ts // 8) * 8
    if seq_len >= _MIN_GRID_STEPS * 8:
        # Only let the tile grow beyond 8 rows once we still keep >= 8 grid steps.
        ts = min(ts, max(8, ((seq_len // _MIN_GRID_STEPS) // 8) * 8))
    else:
        ts = 8
    return ts


def prepare_pe_operand(pe_table: jnp.ndarray, S: int, B: int, D: int):
    """One-time (model-setup) preparation of the pe operand for a given (S, B, D).

    pe is a fixed buffer, so any pre-broadcast / lane padding done here is a one-time
    cost, NOT per forward call.  Returns (pe_in, lane_repeat):
      * D % 128 == 0 and B > 1 : pe_in = (S, D), lane_repeat = B (in-kernel tile).
      * otherwise              : pe_in = (S, max(B*D, 128)), lane_repeat = 1.
    """
    if B > 1 and D % 128 == 0:
        return pe_table[:S], B                                  # (S, D)
    W = B * D
    pe_in = pe_table[:S] if B == 1 else jnp.tile(pe_table[:S], (1, B))   # (S, W)
    if W < 128:
        # Keep output stores lane-dense (avoid masked partial stores).
        pe_in = jnp.pad(pe_in, ((0, 0), (0, 128 - W)))
    return pe_in, 1


def positional_encoding_forward(x: jnp.ndarray,
                                pe_in: jnp.ndarray,
                                scale: jnp.ndarray,
                                lane_repeat: int) -> jnp.ndarray:
    """x: (S, B, D); pe_in/lane_repeat from prepare_pe_operand; scale: (1,) f32.

    Eval-mode forward: out = x + scale * pe[:S] (dropout == identity)."""
    S, B, D = x.shape
    W = B * D
    pe_w = pe_in.shape[1]

    x2 = x.reshape(S, W)                      # lane-dense 2D view (contiguous, free)
    pad_w = 0
    if lane_repeat == 1 and pe_w > W:
        # Small-lane fallback: pad x to the same 128-lane width as pe_in.
        pad_w = pe_w - W
        x2 = jnp.pad(x2, ((0, 0), (0, pad_w)))
    W_out = x2.shape[1]
    assert pe_w * lane_repeat == W_out

    row_bytes_x = W_out * x.dtype.itemsize
    ts = _choose_tile_s(S, row_bytes_x)
    grid = (pl.cdiv(S, ts),)

    kernel = functools.partial(_pe_kernel, lane_repeat=lane_repeat)
    out2 = pl.pallas_call(
        kernel,
        out_shape=jax.ShapeDtypeStruct((S, W_out), x.dtype),
        grid_spec=pltpu.PrefetchScalarGridSpec(
            num_scalar_prefetch=0,
            grid=grid,
            in_specs=[
                pl.BlockSpec(memory_space=pltpu.MemorySpace.SMEM),   # scale (1,)
                pl.BlockSpec((ts, W_out), lambda i: (i, 0)),         # x tile (lane dense)
                pl.BlockSpec((ts, pe_w), lambda i: (i, 0)),          # pe tile (narrow)
            ],
            out_specs=pl.BlockSpec((ts, W_out), lambda i: (i, 0)),
        ),
        compiler_params=pltpu.CompilerParams(
            dimension_semantics=("parallel",),
            # default scoped-VMEM limit is plenty for ~2 MiB tiles on v5e/v6e/v7x
        ),
    )(scale, x2, pe_in)

    if pad_w:
        out2 = out2[:, :W]
    return out2.reshape(S, B, D)


def _run_case(S, B, D, max_len, key, dtype=jnp.float32, atol=1e-6):
    x = jax.random.normal(key, (S, B, D), dtype=jnp.float32).astype(dtype)
    scale = jnp.full((1,), 0.5, dtype=jnp.float32)    # learned scalar (init = ones(1))
    pe_table = _build_pe(max_len, D)                  # registered buffer 'pe' (2D)

    # One-time setup (pe is fixed) + per-call forward.
    pe_in, lane_repeat = prepare_pe_operand(pe_table, S, B, D)
    out = positional_encoding_forward(x, pe_in, scale, lane_repeat)
    out = jax.block_until_ready(out)

    # Plain-JAX reference (eval-mode dropout == identity), computed in f32.
    ref = (x.astype(jnp.float32) + scale[0] * pe_table[:S][:, None, :]).astype(dtype)
    assert out.shape == x.shape and out.dtype == x.dtype
    assert jnp.allclose(out.astype(jnp.float32), ref.astype(jnp.float32), atol=atol), \
        f"mismatch vs reference for {(S, B, D, dtype)}"


if __name__ == "__main__":
    key = jax.random.PRNGKey(0)
    k1, k2, k3 = jax.random.split(key, 3)

    # Lane-aligned d_model -> in-kernel pe replication path, 8 grid steps (megacore).
    _run_case(S=64, B=4, D=128, max_len=256, key=k1)
    # Small unaligned d_model -> one-time pre-broadcast + lane pad to 128.
    _run_case(S=8, B=2, D=32, max_len=64, key=k2)
    # bf16 activations: f32 add in-kernel, bf16 store (half the HBM traffic).
    _run_case(S=64, B=4, D=128, max_len=256, key=k3, dtype=jnp.bfloat16, atol=5e-2)

    print("KERNEL_OK")
</pallas_src>

<mosaic_0001>
module attributes {stable_mosaic.version = 11 : i64} {
  func.func @_pe_kernel(%arg0: i32, %arg1: memref<1xf32, #tpu.memory_space<smem>>, %arg2: memref<8x512xf32, #tpu.memory_space<vmem>>, %arg3: memref<8x128xf32, #tpu.memory_space<vmem>>, %arg4: memref<8x512xf32, #tpu.memory_space<vmem>>) attributes {dimension_semantics = [#tpu.dimension_semantics<parallel>], iteration_bounds = array<i64: 8>, scalar_prefetch = 0 : i64, scratch_operands = 0 : i64, tpu.core_type = #tpu.core_type<tc>, window_params = [{transform_indices = @transform_0, window_bounds = array<i64: 1>}, {transform_indices = @transform_1, window_bounds = array<i64: 8, 512>}, {transform_indices = @transform_2, window_bounds = array<i64: 8, 128>}, {transform_indices = @transform_3, window_bounds = array<i64: 8, 512>}]} {
    %c0 = arith.constant 0 : index
    %0 = memref.load %arg1[%c0] : memref<1xf32, #tpu.memory_space<smem>>
    %c0_0 = arith.constant 0 : index
    %c0_1 = arith.constant 0 : index
    %1 = vector.load %arg3[%c0_0, %c0_1] : memref<8x128xf32, #tpu.memory_space<vmem>>, vector<8x128xf32>
    %2 = vector.broadcast %0 : f32 to vector<8x128xf32>
    %3 = arith.mulf %2, %1 : vector<8x128xf32>
    %4 = tpu.concatenate %3, %3, %3, %3 in 1 : vector<8x128xf32>, vector<8x128xf32>, vector<8x128xf32>, vector<8x128xf32> -> vector<8x512xf32>
    %c0_2 = arith.constant 0 : index
    %c0_3 = arith.constant 0 : index
    %5 = vector.load %arg2[%c0_2, %c0_3] : memref<8x512xf32, #tpu.memory_space<vmem>>, vector<8x512xf32>
    %6 = arith.addf %5, %4 : vector<8x512xf32>
    %c0_4 = arith.constant 0 : index
    %c0_5 = arith.constant 0 : index
    %7 = vector.load %arg4[%c0_4, %c0_5] : memref<8x512xf32, #tpu.memory_space<vmem>>, vector<8x512xf32>
    tpu.vector_store %arg4[%c0_4, %c0_5], %6 {strides = array<i32>} : memref<8x512xf32, #tpu.memory_space<vmem>>, vector<8x512xf32>,
    return
  }
  func.func @transform_0(%arg0: i32) -> i32 {
    %c0_i32 = arith.constant 0 : i32
    %c0_i32_0 = arith.constant 0 : i32
    return %c0_i32 : i32
  }
  func.func @transform_1(%arg0: i32) -> (i32, i32) {
    %c0_i32 = arith.constant 0 : i32
    %c0_i32_0 = arith.constant 0 : i32
    return %arg0, %c0_i32 : i32, i32
  }
  func.func @transform_2(%arg0: i32) -> (i32, i32) {
    %c0_i32 = arith.constant 0 : i32
    %c0_i32_0 = arith.constant 0 : i32
    return %arg0, %c0_i32 : i32, i32
  }
  func.func @transform_3(%arg0: i32) -> (i32, i32) {
    %c0_i32 = arith.constant 0 : i32
    %c0_i32_0 = arith.constant 0 : i32
    return %arg0, %c0_i32 : i32, i32
  }
}

</mosaic_0001>

<llo_original>
// kernel: tpu_custom_call.1
$region0: #{tpu_custom_call.1}
  #allocation0 [shape = 'u32[]', space=smem, size = 0x4, offset = 0x4, fixed_abs, tag = 'smem constant byte address 0x4 - core index']
  #allocation1 [shape = 'u32[144,128]{1,0:T(1,128)}', space=vmem, size = 0x12000, scoped, tag = 'internal scratch']
  #allocation2 [shape = 'f32[1]{0:T(128)S(6)}', space=smem, size = 0x200, scoped, tag = 'scoped memory for tpu_custom_call.1']
  %s0 = inlined_call_operand.<no memory space> [shape: f32[1], index: 0, kind: input, shape index: {}]
  %s1 = inlined_call_operand.hbm [shape: f32[64,512], index: 1, kind: input, shape index: {}]
  %s2 = inlined_call_operand.hbm [shape: f32[64,128], index: 2, kind: input, shape index: {}]
  %s3 = inlined_call_operand.hbm [shape: f32[64,512], index: 3, kind: output, shape index: {}]
  %s4 = sld [smem:[#allocation0]]
  $region53: #{tpu_custom_call.1} parent=0
    _
  %s6 = ssub.s32 1, %s4
  %s7 = scalar_select 0, %s6, %s4
  %8 = sst [smem:[#allocation2]] %s0
  $region1: #{tpu_custom_call.1} parent=0
    #allocation3 [shape = 'u8[32768]{0}', space=vmem, size = 0x8000, scoped, tag = 'input window, operand 1']
    #allocation4 [shape = 's32[2]{0}', space=sflag, size = 0x8, scoped, tag = 'scoped memory for tpu_custom_call.1']
    #allocation5 [shape = 's32[2]{0}', space=sflag, size = 0x8, scoped, tag = 'scoped memory for tpu_custom_call.1']
    #allocation6 [shape = 'u8[8192]{0}', space=vmem, size = 0x2000, scoped, tag = 'input window, operand 2']
    #allocation7 [shape = 's32[2]{0}', space=sflag, size = 0x8, scoped, tag = 'scoped memory for tpu_custom_call.1']
    #allocation8 [shape = 'u8[32768]{0}', space=vmem, size = 0x8000, scoped, tag = 'output window, operand 0']
    %9 = vsyncpa [#allocation4], 0
    %s10 = scalar_lea.sflag [#allocation4], 1
    %11 = vsyncpa %s10, 0
    %12 = vsyncpa [#allocation7], 0
    %s13 = scalar_lea.sflag [#allocation7], 1
    %14 = vsyncpa %s13, 0
    %15 = vsyncpa [#allocation5], 0
    %s16 = scalar_lea.sflag [#allocation5], 1
    %17 = vsyncpa %s16, 0
    loop: start=0, step=1, limit=10
    $region2: #{tpu_custom_call.1} parent=1 // loop_pre_header
      _
    $region3: #{tpu_custom_call.1} parent=1 // loop_header
      %s19 = sphi 0, %s23
      %p20 = scmp.ge.s32.totalorder %s19, 10
      %s27 = sphi 0, %s27
      %s29 = sphi 0, %s27
      %s30 = sphi 0, %s29
      %s44 = sphi 0, %s30
      %s50 = sphi 0, %s52
      %s53 = sphi 0, %s50
      %s54 = sphi 0, %s53
      %s70 = sphi 0, %s54
      %s76 = sphi 0, %s78
      %s79 = sphi 0, %s76
      %s80 = sphi 0, %s79
      %s96 = sphi 0, %s80
      %s102 = sphi 0, %s104
      %s105 = sphi 0, %s102
      %s106 = sphi 0, %s105
      %s122 = sphi 0, %s106
    $region4: #{tpu_custom_call.1} parent=1 // loop_header_branch
      %22 = sbr.rel (%p20) target = $region8
    $region5: #{tpu_custom_call.1} parent=1 // loop_body
      %s24 = ssub.s32 %s19, 1
      %s25 = ssub.s32 %s19, 2
      %s26 = sadd.s32 %s19, 1
      %s28 = sadd.s32 %s27, 1
      %p31 = scmp.eq.s32.totalorder %s19, 7
      %p32 = scmp.ne.s32.totalorder %s27, %s29
      %p33 = scmp.eq.s32.totalorder %s19, 0
      %p34 = por %p32, %p33
      %p35 = scmp.ne.s32.totalorder %s27, %s29
      %p36 = scmp.eq.s32.totalorder %s24, 7
      %p37 = por %p35, %p36
      %p38 = scmp.ne.s32.totalorder %s29, %s30
      %p39 = scmp.eq.s32.totalorder %s24, 0
      %p40 = por %p38, %p39
      %p41 = scmp.ne.s32.totalorder %s29, %s30
      %p42 = scmp.eq.s32.totalorder %s25, 7
      %p43 = por %p41, %p42
      %p45 = scmp.ne.s32.totalorder %s30, %s44
      %p46 = scmp.eq.s32.totalorder %s25, 0
      %p47 = por %p45, %p46
      %s48 = ssub.s32 %s19, %s26
      %p49 = scmp.eq.s32.totalorder %s48, 0
      %s51 = sadd.s32 %s50, 1
      %s52 = scalar_select %p49, %s50, %s51
      %p55 = pneg %p49
      %p56 = scmp.eq.s32.totalorder %s19, 7
      %p57 = por %p55, %p56
      %p58 = scmp.ne.s32.totalorder %s50, %s53
      %p59 = scmp.eq.s32.totalorder %s19, 0
      %p60 = por %p58, %p59
      %p61 = scmp.ne.s32.totalorder %s50, %s53
      %p62 = scmp.eq.s32.totalorder %s24, 7
      %p63 = por %p61, %p62
      %p64 = scmp.ne.s32.totalorder %s53, %s54
      %p65 = scmp.eq.s32.totalorder %s24, 0
      %p66 = por %p64, %p65
      %p67 = scmp.ne.s32.totalorder %s53, %s54
      %p68 = scmp.eq.s32.totalorder %s25, 7
      %p69 = por %p67, %p68
      %p71 = scmp.ne.s32.totalorder %s54, %s70
      %p72 = scmp.eq.s32.totalorder %s25, 0
      %p73 = por %p71, %p72
      %s74 = ssub.s32 %s19, %s26
      %p75 = scmp.eq.s32.totalorder %s74, 0
      %s77 = sadd.s32 %s76, 1
      %s78 = scalar_select %p75, %s76, %s77
      %p81 = pneg %p75
      %p82 = scmp.eq.s32.totalorder %s19, 7
      %p83 = por %p81, %p82
      %p84 = scmp.ne.s32.totalorder %s76, %s79
      %p85 = scmp.eq.s32.totalorder %s19, 0
      %p86 = por %p84, %p85
      %p87 = scmp.ne.s32.totalorder %s76, %s79
      %p88 = scmp.eq.s32.totalorder %s24, 7
      %p89 = por %p87, %p88
      %p90 = scmp.ne.s32.totalorder %s79, %s80
      %p91 = scmp.eq.s32.totalorder %s24, 0
      %p92 = por %p90, %p91
      %p93 = scmp.ne.s32.totalorder %s79, %s80
      %p94 = scmp.eq.s32.totalorder %s25, 7
      %p95 = por %p93, %p94
      %p97 = scmp.ne.s32.totalorder %s80, %s96
      %p98 = scmp.eq.s32.totalorder %s25, 0
      %p99 = por %p97, %p98
      %s100 = ssub.s32 %s19, %s26
      %p101 = scmp.eq.s32.totalorder %s100, 0
      %s103 = sadd.s32 %s102, 1
      %s104 = scalar_select %p101, %s102, %s103
      %p107 = pneg %p101
      %p108 = scmp.eq.s32.totalorder %s19, 7
      %p109 = por %p107, %p108
      %p110 = scmp.ne.s32.totalorder %s102, %s105
      %p111 = scmp.eq.s32.totalorder %s19, 0
      %p112 = por %p110, %p111
      %p113 = scmp.ne.s32.totalorder %s102, %s105
      %p114 = scmp.eq.s32.totalorder %s24, 7
      %p115 = por %p113, %p114
      %p116 = scmp.ne.s32.totalorder %s105, %s106
      %p117 = scmp.eq.s32.totalorder %s24, 0
      %p118 = por %p116, %p117
      %p119 = scmp.ne.s32.totalorder %s105, %s106
      %p120 = scmp.eq.s32.totalorder %s25, 7
      %p121 = por %p119, %p120
      %p123 = scmp.ne.s32.totalorder %s106, %s122
      %p124 = scmp.eq.s32.totalorder %s25, 0
      %p125 = por %p123, %p124
      %p126 = scmp.le.s32.totalorder 1, %s19
      %p127 = scmp.lt.s32.totalorder %s19, 9
      %p128 = pnand %p126, %p127
      %p129 = pneg %p128
      // Predicated region
      $region9: #{tpu_custom_call.1} parent=5 // pred_check
        _
      $region10: #{tpu_custom_call.1} parent=5 // pred_check_branch
        %131 = sbr.rel (%p128) target = $region12
      $region11: #{tpu_custom_call.1} parent=5 // pred_region
        %s132 = ssub.s32 %s19, 1
        // Predicated region
        $region13: #{tpu_custom_call.1} parent=11 // pred_check
          %p133 = pneg %p40
        $region14: #{tpu_custom_call.1} parent=11 // pred_check_branch
          %135 = sbr.rel (%p133) target = $region16
        $region15: #{tpu_custom_call.1} parent=11 // pred_region
          _
        $region16: #{tpu_custom_call.1} parent=11 // pred_fallthru
          _
      $region12: #{tpu_custom_call.1} parent=5 // pred_fallthru
        _
      %p136 = scmp.lt.s32.totalorder %s19, 8
      // Predicated region
      $region17: #{tpu_custom_call.1} parent=5 // pred_check
        %p137 = pneg %p136
      $region18: #{tpu_custom_call.1} parent=5 // pred_check_branch
        %139 = sbr.rel (%p137) target = $region20
      $region19: #{tpu_custom_call.1} parent=5 // pred_region
        // Predicated region
        $region21: #{tpu_custom_call.1} parent=19 // pred_check
          %p140 = pneg %p60
        $region22: #{tpu_custom_call.1} parent=19 // pred_check_branch
          %142 = sbr.rel (%p140) target = $region24
        $region23: #{tpu_custom_call.1} parent=19 // pred_region
          %s143 = sand.u32 %s50, 1
          %s144 = scalar_lea.sflag [#allocation4], %s143
          %s145 = sand.u32 %s50, 1
          %s146 = smul.addr %s145, 32
          %s147 = scalar_lea.vmem [#allocation3], %s146
          %s149 = ssub.s32 512, 512
          %150 = vsyncadd %s144, %s149
          %s151 = smul.addr %s19, 4
          %s152 = smul.addr %s151, 128
          %s153 = scalar_lea.hbm %s1, %s152
          %s155 = sshll.u32 %s147, 4
          %s156 = int_to_ptr.vmem [resolvable:$true] %s155
          %158 = dma.hbm_to_vmem [thread:$0]  %s153, 512, %s156, %s144
        $region24: #{tpu_custom_call.1} parent=19 // pred_fallthru
          _
        // Predicated region
        $region25: #{tpu_custom_call.1} parent=19 // pred_check
          %p159 = pneg %p86
        $region26: #{tpu_custom_call.1} parent=19 // pred_check_branch
          %161 = sbr.rel (%p159) target = $region28
        $region27: #{tpu_custom_call.1} parent=19 // pred_region
          %s162 = sand.u32 %s76, 1
          %s163 = scalar_lea.sflag [#allocation7], %s162
          %s164 = sand.u32 %s76, 1
          %s165 = smul.addr %s164, 8
          %s166 = scalar_lea.vmem [#allocation6], %s165
          %s168 = ssub.s32 128, 128
          %169 = vsyncadd %s163, %s168
          %s170 = smul.addr %s19, 128
          %s171 = scalar_lea.hbm %s2, %s170
          %s173 = sshll.u32 %s166, 4
          %s174 = int_to_ptr.vmem [resolvable:$true] %s173
          %176 = dma.hbm_to_vmem [thread:$0]  %s171, 128, %s174, %s163
        $region28: #{tpu_custom_call.1} parent=19 // pred_fallthru
          _
      $region20: #{tpu_custom_call.1} parent=5 // pred_fallthru
        _
      %p177 = scmp.le.s32.totalorder 1, %s19
      %p178 = scmp.lt.s32.totalorder %s19, 9
      %p179 = pnand %p177, %p178
      %p180 = pneg %p179
      // Predicated region
      $region29: #{tpu_custom_call.1} parent=5 // pred_check
        _
      $region30: #{tpu_custom_call.1} parent=5 // pred_check_branch
        %182 = sbr.rel (%p179) target = $region32
      $region31: #{tpu_custom_call.1} parent=5 // pred_region
        %s183 = ssub.s32 %s19, 1
        %s184 = sand.u32 %s53, 1
        %s185 = scalar_lea.sflag [#allocation4], %s184
        %s186 = sand.u32 %s53, 1
        %s187 = smul.addr %s186, 32
        %s188 = scalar_lea.vmem [#allocation3], %s187
        // Predicated region
        $region33: #{tpu_custom_call.1} parent=31 // pred_check
          %p189 = pneg %p66
        $region34: #{tpu_custom_call.1} parent=31 // pred_check_branch
          %191 = sbr.rel (%p189) target = $region36
        $region35: #{tpu_custom_call.1} parent=31 // pred_region
          %192 = dma.done %s185, 512
        $region36: #{tpu_custom_call.1} parent=31 // pred_fallthru
          _
        %s193 = sand.u32 %s79, 1
        %s194 = scalar_lea.sflag [#allocation7], %s193
        %s195 = sand.u32 %s79, 1
        %s196 = smul.addr %s195, 8
        %s197 = scalar_lea.vmem [#allocation6], %s196
        // Predicated region
        $region37: #{tpu_custom_call.1} parent=31 // pred_check
          %p198 = pneg %p92
        $region38: #{tpu_custom_call.1} parent=31 // pred_check_branch
          %200 = sbr.rel (%p198) target = $region40
        $region39: #{tpu_custom_call.1} parent=31 // pred_region
          %201 = dma.done %s194, 128
        $region40: #{tpu_custom_call.1} parent=31 // pred_fallthru
          _
        %p202 = pneg %p40
        %p203 = pneg %p37
        %s204 = sand.u32 %s53, 1
        %s205 = scalar_lea.sflag [#allocation4], %s204
        %s206 = sand.u32 %s53, 1
        %s207 = smul.addr %s206, 32
        %s208 = scalar_lea.vmem [#allocation3], %s207
        %p209 = pneg %p66
        %p210 = pneg %p63
        %s211 = sand.u32 %s79, 1
        %s212 = scalar_lea.sflag [#allocation7], %s211
        %s213 = sand.u32 %s79, 1
        %s214 = smul.addr %s213, 8
        %s215 = scalar_lea.vmem [#allocation6], %s214
        %p216 = pneg %p92
        %p217 = pneg %p89
        %p218 = pneg %p118
        %p219 = pneg %p115
        %s220 = sand.u32 %s105, 1
        %s221 = scalar_lea.sflag [#allocation5], %s220
        %s222 = sand.u32 %s105, 1
        %s223 = smul.addr %s222, 32
        %s224 = scalar_lea.vmem [#allocation8], %s223
        %s225 = sld [smem:[#allocation2]]
        %v226 = vld [vmem:[%s197] sm:$0xff]
        %v227 = vstv %s225
        %v228 = vmul.f32 %v227, %v226
        %v229 = vld [vmem:[%s188] sm:$0xff]
        %v230 = vld [vmem:[%s188 + $0x8] sm:$0xff]
        %v231 = vld [vmem:[%s188 + $0x10] sm:$0xff]
        %v232 = vld [vmem:[%s188 + $0x18] sm:$0xff]
        %v233 = vadd.f32 %v229, %v228
        %v234 = vadd.f32 %v230, %v228
        %v235 = vadd.f32 %v231, %v228
        %v236 = vadd.f32 %v232, %v228
        %237 = vst [vmem:[%s224] sm:$0xff] %v233
        %238 = vst [vmem:[%s224 + $0x8] sm:$0xff] %v234
        %239 = vst [vmem:[%s224 + $0x10] sm:$0xff] %v235
        %240 = vst [vmem:[%s224 + $0x18] sm:$0xff] %v236
        %s241 = sand.u32 %s105, 1
        %s242 = scalar_lea.sflag [#allocation5], %s241
        %s243 = sand.u32 %s105, 1
        %s244 = smul.addr %s243, 32
        %s245 = scalar_lea.vmem [#allocation8], %s244
        // Predicated region
        $region41: #{tpu_custom_call.1} parent=31 // pred_check
          %p246 = pneg %p115
        $region42: #{tpu_custom_call.1} parent=31 // pred_check_branch
          %248 = sbr.rel (%p246) target = $region44
        $region43: #{tpu_custom_call.1} parent=31 // pred_region
          %s250 = ssub.s32 512, 512
          %251 = vsyncadd %s242, %s250
          %s252 = smul.addr %s24, 4
          %s253 = smul.addr %s252, 128
          %s254 = scalar_lea.hbm %s3, %s253
          %s256 = sshll.u32 %s245, 4
          %s257 = int_to_ptr.vmem [resolvable:$true] %s256
          %259 = dma.vmem_to_hbm [thread:$0]  %s257, 512, %s254, %s242
        $region44: #{tpu_custom_call.1} parent=31 // pred_fallthru
          _
      $region32: #{tpu_custom_call.1} parent=5 // pred_fallthru
        _
      %p260 = scmp.le.s32.totalorder 2, %s19
      // Predicated region
      $region45: #{tpu_custom_call.1} parent=5 // pred_check
        %p261 = pneg %p260
      $region46: #{tpu_custom_call.1} parent=5 // pred_check_branch
        %263 = sbr.rel (%p261) target = $region48
      $region47: #{tpu_custom_call.1} parent=5 // pred_region
        %s264 = ssub.s32 %s19, 2
        // Predicated region
        $region49: #{tpu_custom_call.1} parent=47 // pred_check
          %p265 = pneg %p121
        $region50: #{tpu_custom_call.1} parent=47 // pred_check_branch
          %267 = sbr.rel (%p265) target = $region52
        $region51: #{tpu_custom_call.1} parent=47 // pred_region
          %s268 = sand.u32 %s106, 1
          %s269 = scalar_lea.sflag [#allocation5], %s268
          %s270 = sand.u32 %s106, 1
          %s271 = smul.addr %s270, 32
          %s272 = scalar_lea.vmem [#allocation8], %s271
          %273 = dma.done %s269, 512
        $region52: #{tpu_custom_call.1} parent=47 // pred_fallthru
          _
      $region48: #{tpu_custom_call.1} parent=5 // pred_fallthru
        _
    $region6: #{tpu_custom_call.1} parent=1 // loop_footer
      %s23 = sadd.s32 1, %s19
    $region7: #{tpu_custom_call.1} parent=1 // loop_footer_branch
      %18 = sbr.rel target = $region3
    $region8: #{tpu_custom_call.1} parent=1 // loop_exit
      _
    %274 = vsyncpa [#allocation4], 1
    %s275 = scalar_lea.sflag [#allocation4], 1
    %276 = vsyncpa %s275, 1
    %277 = vsyncpa [#allocation7], 1
    %s278 = scalar_lea.sflag [#allocation7], 1
    %279 = vsyncpa %s278, 1
    %280 = vsyncpa [#allocation5], 1
    %s281 = scalar_lea.sflag [#allocation5], 1
    %282 = vsyncpa %s281, 1

</llo_original>
